<compile_context>
chip_gen: v5e
topology: v5e:2x2
jax: 0.10.0
libtpu: 0.0.40
codegen_flags: <defaults>
</compile_context>

<pallas_src>
import functools
import math

import jax
import jax.numpy as jnp
import numpy as np
from jax.experimental import pallas as pl
from jax.experimental.pallas import tpu as pltpu


def rnn_kernel(ids_ref, emb_ref, wih_ref, whh_ref, b_ref, wfc_ref, bfc_ref,
               logits_ref, hid_ref, *, seq_len, batch_pad):
    n = seq_len * batch_pad
    v_pad = emb_ref.shape[0]

    # --- fused embedding lookup: one-hot(ids) @ table (MXU-friendly, no
    #     dynamic indexing inside the kernel) ------------------------------
    ids = ids_ref[...]                                             # (n, 1) i32
    vocab_iota = jax.lax.broadcasted_iota(jnp.int32, (n, v_pad), 1)
    onehot = (ids == vocab_iota).astype(jnp.float32)               # (n, v_pad)
    embedded = jnp.dot(onehot, emb_ref[...],
                       preferred_element_type=jnp.float32)         # (n, h_pad)

    # --- input projection for ALL timesteps at once (hoisted out of the
    #     serial chain): pre[t*B + b] = x_{b,t} @ W_ih^T + (b_ih + b_hh) ----
    pre = jnp.dot(embedded, wih_ref[...],
                  preferred_element_type=jnp.float32) + b_ref[...]  # (n, h_pad)

    # --- serial recurrence (PyTorch nn.RNN, tanh), fully unrolled ---------
    #     h_t = tanh(pre_t + h_{t-1} @ W_hh^T),  h_0 = 0  (init_hidden)
    whh = whh_ref[...]
    h = jnp.zeros((batch_pad, whh.shape[1]), jnp.float32)
    for t in range(seq_len):                       # static, unrolled at trace
        x_t = pre[t * batch_pad:(t + 1) * batch_pad, :]   # aligned static slice
        h = jnp.tanh(x_t + jnp.dot(h, whh, preferred_element_type=jnp.float32))

    # --- epilogue: fc on the last hidden state; lane-dense 128-wide stores -
    hid_ref[...] = h
    logits_ref[...] = (jnp.dot(h, wfc_ref[...],
                               preferred_element_type=jnp.float32)
                       + bfc_ref[...])


def _round_up(x, m):
    return ((x + m - 1) // m) * m


def _pad2(a, rows, cols):
    return jnp.pad(a, ((0, rows - a.shape[0]), (0, cols - a.shape[1])))


def rnn_model_forward(x_ids, params):
    """x_ids: (B, T) int32 token ids.  Returns (logits (B, O), hidden (1, B, H))."""
    emb_table = params["embedding"]          # (V, H)
    w_ih_t = params["w_ih_t"]                # (H, H)  == W_ih^T
    w_hh_t = params["w_hh_t"]                # (H, H)  == W_hh^T
    b = params["b"]                          # (1, H)  == b_ih + b_hh
    w_fc_t = params["w_fc_t"]                # (H, O)  == W_fc^T
    b_fc = params["b_fc"]                    # (1, O)

    B, T = x_ids.shape
    V, H = emb_table.shape
    O = w_fc_t.shape[1]

    LANE, SUB = 128, 8
    B_pad = _round_up(max(B, SUB), SUB)      # fill sublanes (B=2 -> 8)
    H_pad = _round_up(H, LANE)               # fill lanes   (H=128 -> 128, no pad)
    O_pad = _round_up(O, LANE)               # fill lanes   (O=50 -> 128)
    V_pad = _round_up(V, LANE)               # clean MXU contraction dim

    # Zero-pad all operands.  Padding is exact: padded columns of h stay 0
    # through tanh(0)=0, padded batch rows / logits columns are sliced away.
    emb_p = _pad2(emb_table.astype(jnp.float32), V_pad, H_pad)
    wih_p = _pad2(w_ih_t, H_pad, H_pad)
    whh_p = _pad2(w_hh_t, H_pad, H_pad)
    b_p = _pad2(b, 1, H_pad)
    wfc_p = _pad2(w_fc_t, H_pad, O_pad)
    bfc_p = _pad2(b_fc, 1, O_pad)

    # Token ids, time-major and batch-padded: row index = t * B_pad + b.
    ids_p = jnp.pad(x_ids.astype(jnp.int32), ((0, B_pad - B), (0, 0)))  # (B_pad, T)
    ids_tm = jnp.transpose(ids_p, (1, 0)).reshape(T * B_pad, 1)         # (T*B_pad, 1)

    kernel = functools.partial(rnn_kernel, seq_len=T, batch_pad=B_pad)
    vmem = pl.BlockSpec(memory_space=pltpu.MemorySpace.VMEM)

    logits_p, h_p = pl.pallas_call(
        kernel,
        out_shape=(
            jax.ShapeDtypeStruct((B_pad, O_pad), jnp.float32),
            jax.ShapeDtypeStruct((B_pad, H_pad), jnp.float32),
        ),
        in_specs=[vmem] * 7,
        out_specs=(vmem, vmem),
    )(ids_tm, emb_p, wih_p, whh_p, b_p, wfc_p, bfc_p)

    logits = logits_p[:B, :O]
    hidden = h_p[:B, :H][None, :, :]   # (1, B, H) to match PyTorch nn.RNN
    return logits, hidden


def rnn_model_reference(x_ids, params):
    """Pure-JAX reference of RNNModel.forward for correctness checking."""
    emb = params["embedding"][x_ids]                       # (B, T, H)
    B, T, H = emb.shape
    h = jnp.zeros((B, H), jnp.float32)
    for t in range(T):
        h = jnp.tanh(emb[:, t, :] @ params["w_ih_t"] + params["b"]
                     + h @ params["w_hh_t"])
    logits = h @ params["w_fc_t"] + params["b_fc"]
    return logits, h[None, :, :]


def init_params(key, input_size, hidden_size, output_size):
    ks = jax.random.split(key, 7)
    k_rnn = 1.0 / math.sqrt(hidden_size)
    # nn.RNN: effective bias = b_ih + b_hh (sum of two independent uniforms).
    b_ih = jax.random.uniform(ks[3], (1, hidden_size), jnp.float32, -k_rnn, k_rnn)
    b_hh = jax.random.uniform(ks[4], (1, hidden_size), jnp.float32, -k_rnn, k_rnn)
    params = {
        # nn.Embedding: N(0, 1)
        "embedding": jax.random.normal(ks[0], (input_size, hidden_size),
                                       jnp.float32),
        # nn.RNN weights U(-1/sqrt(H), 1/sqrt(H)); stored pre-transposed
        "w_ih_t": jax.random.uniform(ks[1], (hidden_size, hidden_size),
                                     jnp.float32, -k_rnn, k_rnn),
        "w_hh_t": jax.random.uniform(ks[2], (hidden_size, hidden_size),
                                     jnp.float32, -k_rnn, k_rnn),
        "b": b_ih + b_hh,
        # nn.Linear(H, O), pre-transposed
        "w_fc_t": jax.random.uniform(ks[5], (hidden_size, output_size),
                                     jnp.float32, -k_rnn, k_rnn),
        "b_fc": jax.random.uniform(ks[6], (1, output_size),
                                   jnp.float32, -k_rnn, k_rnn),
    }
    return params


if __name__ == "__main__":
    # Small shapes consistent with the module's forward:
    #   vocab (input_size)=50, hidden_size=128 (as in the source), output=50,
    #   batch=2, seq=8
    VOCAB, HIDDEN, OUT = 50, 128, 50
    B, T = 2, 8

    key = jax.random.PRNGKey(0)
    k_param, k_ids = jax.random.split(key)
    params = init_params(k_param, VOCAB, HIDDEN, OUT)
    x_ids = jax.random.randint(k_ids, (B, T), 0, VOCAB, dtype=jnp.int32)

    logits, hidden = rnn_model_forward(x_ids, params)
    jax.block_until_ready((logits, hidden))

    assert logits.shape == (B, OUT)
    assert hidden.shape == (1, B, HIDDEN)

    # Correctness check against a pure-JAX reference of the PyTorch forward.
    ref_logits, ref_hidden = rnn_model_reference(x_ids, params)
    np.testing.assert_allclose(np.asarray(logits), np.asarray(ref_logits),
                               rtol=1e-5, atol=1e-5)
    np.testing.assert_allclose(np.asarray(hidden), np.asarray(ref_hidden),
                               rtol=1e-5, atol=1e-5)

    print("KERNEL_OK")
</pallas_src>

<mosaic_0001>
module attributes {stable_mosaic.version = 11 : i64} {
  func.func @rnn_kernel(%arg0: memref<64x1xi32, #tpu.memory_space<vmem>>, %arg1: memref<128x128xf32, #tpu.memory_space<vmem>>, %arg2: memref<128x128xf32, #tpu.memory_space<vmem>>, %arg3: memref<128x128xf32, #tpu.memory_space<vmem>>, %arg4: memref<1x128xf32, #tpu.memory_space<vmem>>, %arg5: memref<128x128xf32, #tpu.memory_space<vmem>>, %arg6: memref<1x128xf32, #tpu.memory_space<vmem>>, %arg7: memref<8x128xf32, #tpu.memory_space<vmem>>, %arg8: memref<8x128xf32, #tpu.memory_space<vmem>>) attributes {dimension_semantics = [], scalar_prefetch = 0 : i64, scratch_operands = 0 : i64, tpu.core_type = #tpu.core_type<tc>} {
    %c0 = arith.constant 0 : index
    %c0_0 = arith.constant 0 : index
    %0 = vector.load %arg0[%c0, %c0_0] : memref<64x1xi32, #tpu.memory_space<vmem>>, vector<64x1xi32>
    %1 = tpu.iota {dimensions = array<i32: 1>} : vector<64x128xi32>
    %2 = vector.broadcast %0 : vector<64x1xi32> to vector<64x128xi32>
    %3 = arith.cmpi eq, %2, %1 : vector<64x128xi32>
    %4 = arith.extui %3 : vector<64x128xi1> to vector<64x128xi32>
    %5 = arith.sitofp %4 : vector<64x128xi32> to vector<64x128xf32>
    %c0_1 = arith.constant 0 : index
    %c0_2 = arith.constant 0 : index
    %6 = vector.load %arg1[%c0_1, %c0_2] : memref<128x128xf32, #tpu.memory_space<vmem>>, vector<128x128xf32>
    %cst = arith.constant dense<0.000000e+00> : vector<64x128xf32>
    %7 = tpu.matmul %5, %6, %cst {dimension_numbers = #tpu.dot_dimension_numbers<[1], [0], [0], [1], [0, 0, 1, 1], [], []>} : vector<64x128xf32>, vector<128x128xf32>, vector<64x128xf32> -> vector<64x128xf32>
    %c0_3 = arith.constant 0 : index
    %c0_4 = arith.constant 0 : index
    %8 = vector.load %arg2[%c0_3, %c0_4] : memref<128x128xf32, #tpu.memory_space<vmem>>, vector<128x128xf32>
    %cst_5 = arith.constant dense<0.000000e+00> : vector<64x128xf32>
    %9 = tpu.matmul %7, %8, %cst_5 {dimension_numbers = #tpu.dot_dimension_numbers<[1], [0], [0], [1], [0, 0, 1, 1], [], []>} : vector<64x128xf32>, vector<128x128xf32>, vector<64x128xf32> -> vector<64x128xf32>
    %c0_6 = arith.constant 0 : index
    %c0_7 = arith.constant 0 : index
    %10 = vector.load %arg4[%c0_6, %c0_7] : memref<1x128xf32, #tpu.memory_space<vmem>>, vector<1x128xf32>
    %11 = vector.broadcast %10 : vector<1x128xf32> to vector<64x128xf32>
    %12 = arith.addf %9, %11 : vector<64x128xf32>
    %c0_8 = arith.constant 0 : index
    %c0_9 = arith.constant 0 : index
    %13 = vector.load %arg3[%c0_8, %c0_9] : memref<128x128xf32, #tpu.memory_space<vmem>>, vector<128x128xf32>
    %cst_10 = arith.constant 0.000000e+00 : f32
    %14 = vector.broadcast %cst_10 : f32 to vector<8x128xf32>
    %15 = vector.extract_strided_slice %12 {offsets = [0, 0], sizes = [8, 128], strides = [1, 1]} : vector<64x128xf32> to vector<8x128xf32>
    %cst_11 = arith.constant dense<0.000000e+00> : vector<8x128xf32>
    %16 = tpu.matmul %14, %13, %cst_11 {dimension_numbers = #tpu.dot_dimension_numbers<[1], [0], [0], [1], [0, 0, 1, 1], [], []>} : vector<8x128xf32>, vector<128x128xf32>, vector<8x128xf32> -> vector<8x128xf32>
    %17 = arith.addf %15, %16 : vector<8x128xf32>
    %18 = math.tanh %17 : vector<8x128xf32>
    %19 = vector.extract_strided_slice %12 {offsets = [8, 0], sizes = [8, 128], strides = [1, 1]} : vector<64x128xf32> to vector<8x128xf32>
    %cst_12 = arith.constant dense<0.000000e+00> : vector<8x128xf32>
    %20 = tpu.matmul %18, %13, %cst_12 {dimension_numbers = #tpu.dot_dimension_numbers<[1], [0], [0], [1], [0, 0, 1, 1], [], []>} : vector<8x128xf32>, vector<128x128xf32>, vector<8x128xf32> -> vector<8x128xf32>
    %21 = arith.addf %19, %20 : vector<8x128xf32>
    %22 = math.tanh %21 : vector<8x128xf32>
    %23 = vector.extract_strided_slice %12 {offsets = [16, 0], sizes = [8, 128], strides = [1, 1]} : vector<64x128xf32> to vector<8x128xf32>
    %cst_13 = arith.constant dense<0.000000e+00> : vector<8x128xf32>
    %24 = tpu.matmul %22, %13, %cst_13 {dimension_numbers = #tpu.dot_dimension_numbers<[1], [0], [0], [1], [0, 0, 1, 1], [], []>} : vector<8x128xf32>, vector<128x128xf32>, vector<8x128xf32> -> vector<8x128xf32>
    %25 = arith.addf %23, %24 : vector<8x128xf32>
    %26 = math.tanh %25 : vector<8x128xf32>
    %27 = vector.extract_strided_slice %12 {offsets = [24, 0], sizes = [8, 128], strides = [1, 1]} : vector<64x128xf32> to vector<8x128xf32>
    %cst_14 = arith.constant dense<0.000000e+00> : vector<8x128xf32>
    %28 = tpu.matmul %26, %13, %cst_14 {dimension_numbers = #tpu.dot_dimension_numbers<[1], [0], [0], [1], [0, 0, 1, 1], [], []>} : vector<8x128xf32>, vector<128x128xf32>, vector<8x128xf32> -> vector<8x128xf32>
    %29 = arith.addf %27, %28 : vector<8x128xf32>
    %30 = math.tanh %29 : vector<8x128xf32>
    %31 = vector.extract_strided_slice %12 {offsets = [32, 0], sizes = [8, 128], strides = [1, 1]} : vector<64x128xf32> to vector<8x128xf32>
    %cst_15 = arith.constant dense<0.000000e+00> : vector<8x128xf32>
    %32 = tpu.matmul %30, %13, %cst_15 {dimension_numbers = #tpu.dot_dimension_numbers<[1], [0], [0], [1], [0, 0, 1, 1], [], []>} : vector<8x128xf32>, vector<128x128xf32>, vector<8x128xf32> -> vector<8x128xf32>
    %33 = arith.addf %31, %32 : vector<8x128xf32>
    %34 = math.tanh %33 : vector<8x128xf32>
    %35 = vector.extract_strided_slice %12 {offsets = [40, 0], sizes = [8, 128], strides = [1, 1]} : vector<64x128xf32> to vector<8x128xf32>
    %cst_16 = arith.constant dense<0.000000e+00> : vector<8x128xf32>
    %36 = tpu.matmul %34, %13, %cst_16 {dimension_numbers = #tpu.dot_dimension_numbers<[1], [0], [0], [1], [0, 0, 1, 1], [], []>} : vector<8x128xf32>, vector<128x128xf32>, vector<8x128xf32> -> vector<8x128xf32>
    %37 = arith.addf %35, %36 : vector<8x128xf32>
    %38 = math.tanh %37 : vector<8x128xf32>
    %39 = vector.extract_strided_slice %12 {offsets = [48, 0], sizes = [8, 128], strides = [1, 1]} : vector<64x128xf32> to vector<8x128xf32>
    %cst_17 = arith.constant dense<0.000000e+00> : vector<8x128xf32>
    %40 = tpu.matmul %38, %13, %cst_17 {dimension_numbers = #tpu.dot_dimension_numbers<[1], [0], [0], [1], [0, 0, 1, 1], [], []>} : vector<8x128xf32>, vector<128x128xf32>, vector<8x128xf32> -> vector<8x128xf32>
    %41 = arith.addf %39, %40 : vector<8x128xf32>
    %42 = math.tanh %41 : vector<8x128xf32>
    %43 = vector.extract_strided_slice %12 {offsets = [56, 0], sizes = [8, 128], strides = [1, 1]} : vector<64x128xf32> to vector<8x128xf32>
    %cst_18 = arith.constant dense<0.000000e+00> : vector<8x128xf32>
    %44 = tpu.matmul %42, %13, %cst_18 {dimension_numbers = #tpu.dot_dimension_numbers<[1], [0], [0], [1], [0, 0, 1, 1], [], []>} : vector<8x128xf32>, vector<128x128xf32>, vector<8x128xf32> -> vector<8x128xf32>
    %45 = arith.addf %43, %44 : vector<8x128xf32>
    %46 = math.tanh %45 : vector<8x128xf32>
    %c0_19 = arith.constant 0 : index
    %c0_20 = arith.constant 0 : index
    %47 = vector.load %arg8[%c0_19, %c0_20] : memref<8x128xf32, #tpu.memory_space<vmem>>, vector<8x128xf32>
    tpu.vector_store %arg8[%c0_19, %c0_20], %46 {strides = array<i32>} : memref<8x128xf32, #tpu.memory_space<vmem>>, vector<8x128xf32>,
    %c0_21 = arith.constant 0 : index
    %c0_22 = arith.constant 0 : index
    %48 = vector.load %arg5[%c0_21, %c0_22] : memref<128x128xf32, #tpu.memory_space<vmem>>, vector<128x128xf32>
    %cst_23 = arith.constant dense<0.000000e+00> : vector<8x128xf32>
    %49 = tpu.matmul %46, %48, %cst_23 {dimension_numbers = #tpu.dot_dimension_numbers<[1], [0], [0], [1], [0, 0, 1, 1], [], []>} : vector<8x128xf32>, vector<128x128xf32>, vector<8x128xf32> -> vector<8x128xf32>
    %c0_24 = arith.constant 0 : index
    %c0_25 = arith.constant 0 : index
    %50 = vector.load %arg6[%c0_24, %c0_25] : memref<1x128xf32, #tpu.memory_space<vmem>>, vector<1x128xf32>
    %51 = vector.broadcast %50 : vector<1x128xf32> to vector<8x128xf32>
    %52 = arith.addf %49, %51 : vector<8x128xf32>
    %c0_26 = arith.constant 0 : index
    %c0_27 = arith.constant 0 : index
    %53 = vector.load %arg7[%c0_26, %c0_27] : memref<8x128xf32, #tpu.memory_space<vmem>>, vector<8x128xf32>
    tpu.vector_store %arg7[%c0_26, %c0_27], %52 {strides = array<i32>} : memref<8x128xf32, #tpu.memory_space<vmem>>, vector<8x128xf32>,
    return
  }
}

</mosaic_0001>

<llo_original>
// kernel: tpu_custom_call.1
$region0: #{tpu_custom_call.1}
  #allocation0 [shape = 'u32[]', space=smem, size = 0x4, offset = 0x4, fixed_abs, tag = 'smem constant byte address 0x4 - core index']
  #allocation1 [shape = 'u32[72,128]{1,0:T(1,128)}', space=vmem, size = 0x9000, scoped, tag = 'internal scratch']
  %s0 = inlined_call_operand.vmem [shape: s32[64,1], index: 0, kind: input, shape index: {}]
  %s1 = inlined_call_operand.hbm [shape: f32[128,128], index: 1, kind: input, shape index: {}]
  %s2 = inlined_call_operand.hbm [shape: f32[128,128], index: 2, kind: input, shape index: {}]
  %s3 = inlined_call_operand.hbm [shape: f32[128,128], index: 3, kind: input, shape index: {}]
  %s4 = inlined_call_operand.vmem [shape: f32[1,128], index: 4, kind: input, shape index: {}]
  %s5 = inlined_call_operand.hbm [shape: f32[128,128], index: 5, kind: input, shape index: {}]
  %s6 = inlined_call_operand.vmem [shape: f32[1,128], index: 6, kind: input, shape index: {}]
  %s7 = inlined_call_operand.hbm [shape: f32[8,128], index: 7, kind: output, shape index: {0}]
  %s8 = inlined_call_operand.hbm [shape: f32[8,128], index: 8, kind: output, shape index: {1}]
  %9 = xla_tuple %s7, %s8
  %s10 = sld [smem:[#allocation0]]
  $region62: #{tpu_custom_call.1} parent=0
    _
  %s12 = ssub.s32 1, %s10
  %s13 = scalar_select 0, %s12, %s10
  $region1: #{tpu_custom_call.1} parent=0
    #allocation2 [shape = 'u8[65536]{0}', space=vmem, size = 0x10000, scoped, tag = 'input window, operand 1, single buffered']
    #allocation3 [shape = 's32[1]{0}', space=sflag, size = 0x4, scoped, tag = 'scoped memory for tpu_custom_call.1']
    #allocation4 [shape = 's32[1]{0}', space=sflag, size = 0x4, scoped, tag = 'scoped memory for tpu_custom_call.1']
    #allocation5 [shape = 'u8[65536]{0}', space=vmem, size = 0x10000, scoped, tag = 'input window, operand 2, single buffered']
    #allocation6 [shape = 's32[1]{0}', space=sflag, size = 0x4, scoped, tag = 'scoped memory for tpu_custom_call.1']
    #allocation7 [shape = 'u8[65536]{0}', space=vmem, size = 0x10000, scoped, tag = 'input window, operand 3, single buffered']
    #allocation8 [shape = 'u8[65536]{0}', space=vmem, size = 0x10000, scoped, tag = 'input window, operand 5, single buffered']
    #allocation9 [shape = 's32[1]{0}', space=sflag, size = 0x4, scoped, tag = 'scoped memory for tpu_custom_call.1']
    #allocation10 [shape = 'u8[4096]{0}', space=vmem, size = 0x1000, scoped, tag = 'output window, operand 0, single buffered']
    #allocation11 [shape = 'u8[4096]{0}', space=vmem, size = 0x1000, scoped, tag = 'output window, operand 1, single buffered']
    #allocation12 [shape = 's32[1]{0}', space=sflag, size = 0x4, scoped, tag = 'scoped memory for tpu_custom_call.1']
    %14 = vsyncpa [#allocation3], 0
    %15 = vsyncpa [#allocation6], 0
    %16 = vsyncpa [#allocation9], 0
    %17 = vsyncpa [#allocation4], 0
    %18 = vsyncpa [#allocation12], 0
    // Predicated region
    $region2: #{tpu_custom_call.1} parent=1 // pred_check
      _
    $region3: #{tpu_custom_call.1} parent=1 // pred_check_branch
      %20 = sbr.rel (0) target = $region5
    $region4: #{tpu_custom_call.1} parent=1 // pred_region
      _
    $region5: #{tpu_custom_call.1} parent=1 // pred_fallthru
      _
    // Predicated region
    $region6: #{tpu_custom_call.1} parent=1 // pred_check
      _
    $region7: #{tpu_custom_call.1} parent=1 // pred_check_branch
      %22 = sbr.rel (0) target = $region9
    $region8: #{tpu_custom_call.1} parent=1 // pred_region
      %24 = vsyncadd [#allocation3], 0
      %s25 = sshll.u32 %s1, 4
      %s26 = int_to_ptr.hbm [resolvable:$true] %s25
      %s27 = sshll.u32 [#allocation2], 4
      %s28 = int_to_ptr.vmem [resolvable:$true] %s27
      %33 = dma.hbm_to_vmem [thread:$0]  %s26, 2048, %s28, [#allocation3], 128, 128, 8
    $region9: #{tpu_custom_call.1} parent=1 // pred_fallthru
      _
    // Predicated region
    $region10: #{tpu_custom_call.1} parent=1 // pred_check
      _
    $region11: #{tpu_custom_call.1} parent=1 // pred_check_branch
      %35 = sbr.rel (0) target = $region13
    $region12: #{tpu_custom_call.1} parent=1 // pred_region
      %37 = vsyncadd [#allocation6], 0
      %s38 = sshll.u32 %s2, 4
      %s39 = int_to_ptr.hbm [resolvable:$true] %s38
      %s40 = sshll.u32 [#allocation5], 4
      %s41 = int_to_ptr.vmem [resolvable:$true] %s40
      %46 = dma.hbm_to_vmem [thread:$0]  %s39, 2048, %s41, [#allocation6], 128, 128, 8
    $region13: #{tpu_custom_call.1} parent=1 // pred_fallthru
      _
    // Predicated region
    $region14: #{tpu_custom_call.1} parent=1 // pred_check
      _
    $region15: #{tpu_custom_call.1} parent=1 // pred_check_branch
      %48 = sbr.rel (0) target = $region17
    $region16: #{tpu_custom_call.1} parent=1 // pred_region
      %50 = vsyncadd [#allocation6], 0
      %s51 = sshll.u32 %s3, 4
      %s52 = int_to_ptr.hbm [resolvable:$true] %s51
      %s53 = sshll.u32 [#allocation7], 4
      %s54 = int_to_ptr.vmem [resolvable:$true] %s53
      %59 = dma.hbm_to_vmem [thread:$0]  %s52, 2048, %s54, [#allocation6], 128, 128, 8
    $region17: #{tpu_custom_call.1} parent=1 // pred_fallthru
      _
    // Predicated region
    $region18: #{tpu_custom_call.1} parent=1 // pred_check
      _
    $region19: #{tpu_custom_call.1} parent=1 // pred_check_branch
      %61 = sbr.rel (0) target = $region21
    $region20: #{tpu_custom_call.1} parent=1 // pred_region
      _
    $region21: #{tpu_custom_call.1} parent=1 // pred_fallthru
      _
    // Predicated region
    $region22: #{tpu_custom_call.1} parent=1 // pred_check
      _
    $region23: #{tpu_custom_call.1} parent=1 // pred_check_branch
      %63 = sbr.rel (0) target = $region25
    $region24: #{tpu_custom_call.1} parent=1 // pred_region
      %65 = vsyncadd [#allocation9], 0
      %s66 = sshll.u32 %s5, 4
      %s67 = int_to_ptr.hbm [resolvable:$true] %s66
      %s68 = sshll.u32 [#allocation8], 4
      %s69 = int_to_ptr.vmem [resolvable:$true] %s68
      %74 = dma.hbm_to_vmem [thread:$0]  %s67, 2048, %s69, [#allocation9], 128, 128, 8
    $region25: #{tpu_custom_call.1} parent=1 // pred_fallthru
      _
    // Predicated region
    $region26: #{tpu_custom_call.1} parent=1 // pred_check
      _
    $region27: #{tpu_custom_call.1} parent=1 // pred_check_branch
      %76 = sbr.rel (0) target = $region29
    $region28: #{tpu_custom_call.1} parent=1 // pred_region
      _
    $region29: #{tpu_custom_call.1} parent=1 // pred_fallthru
      _
    // Predicated region
    $region30: #{tpu_custom_call.1} parent=1 // pred_check
      _
    $region31: #{tpu_custom_call.1} parent=1 // pred_check_branch
      %78 = sbr.rel (0) target = $region33
    $region32: #{tpu_custom_call.1} parent=1 // pred_region
      %80 = dma.done [#allocation3], 2048
    $region33: #{tpu_custom_call.1} parent=1 // pred_fallthru
      _
    // Predicated region
    $region34: #{tpu_custom_call.1} parent=1 // pred_check
      _
    $region35: #{tpu_custom_call.1} parent=1 // pred_check_branch
      %82 = sbr.rel (0) target = $region37
    $region36: #{tpu_custom_call.1} parent=1 // pred_region
      %84 = dma.done [#allocation6], 2048
    $region37: #{tpu_custom_call.1} parent=1 // pred_fallthru
      _
    // Predicated region
    $region38: #{tpu_custom_call.1} parent=1 // pred_check
      _
    $region39: #{tpu_custom_call.1} parent=1 // pred_check_branch
      %86 = sbr.rel (0) target = $region41
    $region40: #{tpu_custom_call.1} parent=1 // pred_region
      %88 = dma.done [#allocation6], 2048
    $region41: #{tpu_custom_call.1} parent=1 // pred_fallthru
      _
    // Predicated region
    $region42: #{tpu_custom_call.1} parent=1 // pred_check
      _
    $region43: #{tpu_custom_call.1} parent=1 // pred_check_branch
      %90 = sbr.rel (0) target = $region45
    $region44: #{tpu_custom_call.1} parent=1 // pred_region
      %92 = dma.done [#allocation9], 2048
    $region45: #{tpu_custom_call.1} parent=1 // pred_fallthru
      _
    %v93 = vld [vmem:[%s0] sm:$0xff]
    %v94 = vld [vmem:[%s0 + $0x8] sm:$0xff]
    %v95 = vld [vmem:[%s0 + $0x10] sm:$0xff]
    %v96 = vld [vmem:[%s0 + $0x18] sm:$0xff]
    %v97 = vld [vmem:[%s0 + $0x20] sm:$0xff]
    %v98 = vld [vmem:[%s0 + $0x28] sm:$0xff]
    %v99 = vld [vmem:[%s0 + $0x30] sm:$0xff]
    %v100 = vld [vmem:[%s0 + $0x38] sm:$0xff]
    %v101 = vlaneseq
    %v102 = vand.u32 %v101, 127
    %103 = vset.pattern.permute.xlu0 0
    %104 = vperm.xlu0 %103, %v93
    %v105 = vpop.permute.xlu0 %104
    %106 = vset.pattern.permute.xlu0 0
    %107 = vperm.xlu0 %106, %v94
    %v108 = vpop.permute.xlu0 %107
    %109 = vset.pattern.permute.xlu0 0
    %110 = vperm.xlu0 %109, %v95
    %v111 = vpop.permute.xlu0 %110
    %112 = vset.pattern.permute.xlu0 0
    %113 = vperm.xlu0 %112, %v96
    %v114 = vpop.permute.xlu0 %113
    %115 = vset.pattern.permute.xlu0 0
    %116 = vperm.xlu0 %115, %v97
    %v117 = vpop.permute.xlu0 %116
    %118 = vset.pattern.permute.xlu0 0
    %119 = vperm.xlu0 %118, %v98
    %v120 = vpop.permute.xlu0 %119
    %121 = vset.pattern.permute.xlu0 0
    %122 = vperm.xlu0 %121, %v99
    %v123 = vpop.permute.xlu0 %122
    %124 = vset.pattern.permute.xlu0 0
    %125 = vperm.xlu0 %124, %v100
    %v126 = vpop.permute.xlu0 %125
    %vm127 = vcmp.eq.s32.totalorder %v105, %v102
    %vm128 = vcmp.eq.s32.totalorder %v108, %v102
    %vm129 = vcmp.eq.s32.totalorder %v111, %v102
    %vm130 = vcmp.eq.s32.totalorder %v114, %v102
    %vm131 = vcmp.eq.s32.totalorder %v117, %v102
    %vm132 = vcmp.eq.s32.totalorder %v120, %v102
    %vm133 = vcmp.eq.s32.totalorder %v123, %v102
    %vm134 = vcmp.eq.s32.totalorder %v126, %v102
    %v135 = vsel %vm127, 1, 0
    %v136 = vsel %vm128, 1, 0
    %v137 = vsel %vm129, 1, 0
    %v138 = vsel %vm130, 1, 0
    %v139 = vsel %vm131, 1, 0
    %v140 = vsel %vm132, 1, 0
    %v141 = vsel %vm133, 1, 0
    %v142 = vsel %vm134, 1, 0
    %v143 = vcvt.s32.f32 %v135
    %v144 = vcvt.s32.f32 %v136
    %v145 = vcvt.s32.f32 %v137
    %v146 = vcvt.s32.f32 %v138
    %v147 = vcvt.s32.f32 %v139
    %v148 = vcvt.s32.f32 %v140
    %v149 = vcvt.s32.f32 %v141
    %v150 = vcvt.s32.f32 %v142
    %v151 = vld [vmem:[#allocation2] sm:$0xff]
    %v152 = vld [vmem:[#allocation2 + $0x8] sm:$0xff]
    %v153 = vld [vmem:[#allocation2 + $0x10] sm:$0xff]
    %v154 = vld [vmem:[#allocation2 + $0x18] sm:$0xff]
    %v155 = vld [vmem:[#allocation2 + $0x20] sm:$0xff]
    %v156 = vld [vmem:[#allocation2 + $0x28] sm:$0xff]
    %v157 = vld [vmem:[#allocation2 + $0x30] sm:$0xff]
    %v158 = vld [vmem:[#allocation2 + $0x38] sm:$0xff]
    %v159 = vld [vmem:[#allocation2 + $0x40] sm:$0xff]
    %v160 = vld [vmem:[#allocation2 + $0x48] sm:$0xff]
    %v161 = vld [vmem:[#allocation2 + $0x50] sm:$0xff]
    %v162 = vld [vmem:[#allocation2 + $0x58] sm:$0xff]
    %v163 = vld [vmem:[#allocation2 + $0x60] sm:$0xff]
    %v164 = vld [vmem:[#allocation2 + $0x68] sm:$0xff]
    %v165 = vld [vmem:[#allocation2 + $0x70] sm:$0xff]
    %v166 = vld [vmem:[#allocation2 + $0x78] sm:$0xff]
    %167 = vmatpush.msra.mxu0 %v166
    %168 = vmatpush.msra.mxu0 %v165
    %169 = vmatpush.msra.mxu0 %v164
    %170 = vmatpush.msra.mxu0 %v163
    %171 = vmatpush.msra.mxu0 %v162
    %172 = vmatpush.msra.mxu0 %v161
    %173 = vmatpush.msra.mxu0 %v160
    %174 = vmatpush.msra.mxu0 %v159
    %175 = vmatpush.msra.mxu0 %v158
    %176 = vmatpush.msra.mxu0 %v157
    %177 = vmatpush.msra.mxu0 %v156
    %178 = vmatpush.msra.mxu0 %v155
    %179 = vmatpush.msra.mxu0 %v154
    %180 = vmatpush.msra.mxu0 %v153
    %181 = vmatpush.msra.mxu0 %v152
    %182 = vmatpush.msra.mxu0 %v151
    %183 = vmatmul.f32.gmra.mxu0 %v143
    %v184 = vpop.f32.mrf.mxu0
    %v185 = vadd.f32 0.0, %v184
    %186 = vmatmul.f32.gmra.mxu0 %v144
    %v187 = vpop.f32.mrf.mxu0
    %v188 = vadd.f32 0.0, %v187
    %189 = vmatmul.f32.gmra.mxu0 %v145
    %v190 = vpop.f32.mrf.mxu0
    %v191 = vadd.f32 0.0, %v190
    %192 = vmatmul.f32.gmra.mxu0 %v146
    %v193 = vpop.f32.mrf.mxu0
    %v194 = vadd.f32 0.0, %v193
    %195 = vmatmul.f32.gmra.mxu0 %v147
    %v196 = vpop.f32.mrf.mxu0
    %v197 = vadd.f32 0.0, %v196
    %198 = vmatmul.f32.gmra.mxu0 %v148
    %v199 = vpop.f32.mrf.mxu0
    %v200 = vadd.f32 0.0, %v199
    %201 = vmatmul.f32.gmra.mxu0 %v149
    %v202 = vpop.f32.mrf.mxu0
    %v203 = vadd.f32 0.0, %v202
    %204 = vmatmul.f32.gmra.mxu0 %v150
    %v205 = vpop.f32.mrf.mxu0
    %v206 = vadd.f32 0.0, %v205
    %207 = vdwg.mxu0
    %v208 = vld [vmem:[#allocation5] sm:$0xff]
    %v209 = vld [vmem:[#allocation5 + $0x8] sm:$0xff]
    %v210 = vld [vmem:[#allocation5 + $0x10] sm:$0xff]
    %v211 = vld [vmem:[#allocation5 + $0x18] sm:$0xff]
    %v212 = vld [vmem:[#allocation5 + $0x20] sm:$0xff]
    %v213 = vld [vmem:[#allocation5 + $0x28] sm:$0xff]
    %v214 = vld [vmem:[#allocation5 + $0x30] sm:$0xff]
    %v215 = vld [vmem:[#allocation5 + $0x38] sm:$0xff]
    %v216 = vld [vmem:[#allocation5 + $0x40] sm:$0xff]
    %v217 = vld [vmem:[#allocation5 + $0x48] sm:$0xff]
    %v218 = vld [vmem:[#allocation5 + $0x50] sm:$0xff]
    %v219 = vld [vmem:[#allocation5 + $0x58] sm:$0xff]
    %v220 = vld [vmem:[#allocation5 + $0x60] sm:$0xff]
    %v221 = vld [vmem:[#allocation5 + $0x68] sm:$0xff]
    %v222 = vld [vmem:[#allocation5 + $0x70] sm:$0xff]
    %v223 = vld [vmem:[#allocation5 + $0x78] sm:$0xff]
    %v224 = vld [vmem:[%s4] sm:$0x1]
    %v226 = vperm.slane %v224, 0
    %228 = vmatpush.msra.mxu0 %v223
    %229 = vmatpush.msra.mxu0 %v222
    %230 = vmatpush.msra.mxu0 %v221
    %231 = vmatpush.msra.mxu0 %v220
    %232 = vmatpush.msra.mxu0 %v219
    %233 = vmatpush.msra.mxu0 %v218
    %234 = vmatpush.msra.mxu0 %v217
    %235 = vmatpush.msra.mxu0 %v216
    %236 = vmatpush.msra.mxu0 %v215
    %237 = vmatpush.msra.mxu0 %v214
    %238 = vmatpush.msra.mxu0 %v213
    %239 = vmatpush.msra.mxu0 %v212
    %240 = vmatpush.msra.mxu0 %v211
    %241 = vmatpush.msra.mxu0 %v210
    %242 = vmatpush.msra.mxu0 %v209
    %243 = vmatpush.msra.mxu0 %v208
    %244 = vmatmul.f32.gmra.mxu0 %v185
    %v245 = vpop.f32.mrf.mxu0
    %v246 = vadd.f32 %v226, %v245
    %247 = vmatmul.f32.gmra.mxu0 %v188
    %v248 = vpop.f32.mrf.mxu0
    %v249 = vadd.f32 %v226, %v248
    %250 = vmatmul.f32.gmra.mxu0 %v191
    %v251 = vpop.f32.mrf.mxu0
    %v252 = vadd.f32 %v226, %v251
    %253 = vmatmul.f32.gmra.mxu0 %v194
    %v254 = vpop.f32.mrf.mxu0
    %v255 = vadd.f32 %v226, %v254
    %256 = vmatmul.f32.gmra.mxu0 %v197
    %v257 = vpop.f32.mrf.mxu0
    %v258 = vadd.f32 %v226, %v257
    %259 = vmatmul.f32.gmra.mxu0 %v200
    %v260 = vpop.f32.mrf.mxu0
    %v261 = vadd.f32 %v226, %v260
    %262 = vmatmul.f32.gmra.mxu0 %v203
    %v263 = vpop.f32.mrf.mxu0
    %v264 = vadd.f32 %v226, %v263
    %265 = vmatmul.f32.gmra.mxu0 %v206
    %v266 = vpop.f32.mrf.mxu0
    %v267 = vadd.f32 %v226, %v266
    %268 = vdwg.mxu0
    %v269 = vld [vmem:[#allocation7] sm:$0xff]
    %v270 = vld [vmem:[#allocation7 + $0x8] sm:$0xff]
    %v271 = vld [vmem:[#allocation7 + $0x10] sm:$0xff]
    %v272 = vld [vmem:[#allocation7 + $0x18] sm:$0xff]
    %v273 = vld [vmem:[#allocation7 + $0x20] sm:$0xff]
    %v274 = vld [vmem:[#allocation7 + $0x28] sm:$0xff]
    %v275 = vld [vmem:[#allocation7 + $0x30] sm:$0xff]
    %v276 = vld [vmem:[#allocation7 + $0x38] sm:$0xff]
    %v277 = vld [vmem:[#allocation7 + $0x40] sm:$0xff]
    %v278 = vld [vmem:[#allocation7 + $0x48] sm:$0xff]
    %v279 = vld [vmem:[#allocation7 + $0x50] sm:$0xff]
    %v280 = vld [vmem:[#allocation7 + $0x58] sm:$0xff]
    %v281 = vld [vmem:[#allocation7 + $0x60] sm:$0xff]
    %v282 = vld [vmem:[#allocation7 + $0x68] sm:$0xff]
    %v283 = vld [vmem:[#allocation7 + $0x70] sm:$0xff]
    %v284 = vld [vmem:[#allocation7 + $0x78] sm:$0xff]
    %285 = vmatpush.msra.mxu0 %v284
    %286 = vmatpush.msra.mxu0 %v283
    %287 = vmatpush.msra.mxu0 %v282
    %288 = vmatpush.msra.mxu0 %v281
    %289 = vmatpush.msra.mxu0 %v280
    %290 = vmatpush.msra.mxu0 %v279
    %291 = vmatpush.msra.mxu0 %v278
    %292 = vmatpush.msra.mxu0 %v277
    %293 = vmatpush.msra.mxu0 %v276
    %294 = vmatpush.msra.mxu0 %v275
    %295 = vmatpush.msra.mxu0 %v274
    %296 = vmatpush.msra.mxu0 %v273
    %297 = vmatpush.msra.mxu0 %v272
    %298 = vmatpush.msra.mxu0 %v271
    %299 = vmatpush.msra.mxu0 %v270
    %300 = vmatpush.msra.mxu0 %v269
    %301 = vmatmul.f32.gmra.mxu0 0.0
    %v302 = vpop.f32.mrf.mxu0
    %v303 = vadd.f32 0.0, %v302
    %304 = vdwg.mxu0
    %v305 = vadd.f32 %v246, %v303
    %v306 = vtanh.pop %v305
    %307 = vmatpush.msra.mxu0 %v284
    %308 = vmatpush.msra.mxu0 %v283
    %309 = vmatpush.msra.mxu0 %v282
    %310 = vmatpush.msra.mxu0 %v281
    %311 = vmatpush.msra.mxu0 %v280
    %312 = vmatpush.msra.mxu0 %v279
    %313 = vmatpush.msra.mxu0 %v278
    %314 = vmatpush.msra.mxu0 %v277
    %315 = vmatpush.msra.mxu0 %v276
    %316 = vmatpush.msra.mxu0 %v275
    %317 = vmatpush.msra.mxu0 %v274
    %318 = vmatpush.msra.mxu0 %v273
    %319 = vmatpush.msra.mxu0 %v272
    %320 = vmatpush.msra.mxu0 %v271
    %321 = vmatpush.msra.mxu0 %v270
    %322 = vmatpush.msra.mxu0 %v269
    %323 = vmatmul.f32.gmra.mxu0 %v306
    %v324 = vpop.f32.mrf.mxu0
    %v325 = vadd.f32 0.0, %v324
    %326 = vdwg.mxu0
    %v327 = vadd.f32 %v249, %v325
    %v328 = vtanh.pop %v327
    %329 = vmatpush.msra.mxu0 %v284
    %330 = vmatpush.msra.mxu0 %v283
    %331 = vmatpush.msra.mxu0 %v282
    %332 = vmatpush.msra.mxu0 %v281
    %333 = vmatpush.msra.mxu0 %v280
    %334 = vmatpush.msra.mxu0 %v279
    %335 = vmatpush.msra.mxu0 %v278
    %336 = vmatpush.msra.mxu0 %v277
    %337 = vmatpush.msra.mxu0 %v276
    %338 = vmatpush.msra.mxu0 %v275
    %339 = vmatpush.msra.mxu0 %v274
    %340 = vmatpush.msra.mxu0 %v273
    %341 = vmatpush.msra.mxu0 %v272
    %342 = vmatpush.msra.mxu0 %v271
    %343 = vmatpush.msra.mxu0 %v270
    %344 = vmatpush.msra.mxu0 %v269
    %345 = vmatmul.f32.gmra.mxu0 %v328
    %v346 = vpop.f32.mrf.mxu0
    %v347 = vadd.f32 0.0, %v346
    %348 = vdwg.mxu0
    %v349 = vadd.f32 %v252, %v347
    %v350 = vtanh.pop %v349
    %351 = vmatpush.msra.mxu0 %v284
    %352 = vmatpush.msra.mxu0 %v283
    %353 = vmatpush.msra.mxu0 %v282
    %354 = vmatpush.msra.mxu0 %v281
    %355 = vmatpush.msra.mxu0 %v280
    %356 = vmatpush.msra.mxu0 %v279
    %357 = vmatpush.msra.mxu0 %v278
    %358 = vmatpush.msra.mxu0 %v277
    %359 = vmatpush.msra.mxu0 %v276
    %360 = vmatpush.msra.mxu0 %v275
    %361 = vmatpush.msra.mxu0 %v274
    %362 = vmatpush.msra.mxu0 %v273
    %363 = vmatpush.msra.mxu0 %v272
    %364 = vmatpush.msra.mxu0 %v271
    %365 = vmatpush.msra.mxu0 %v270
    %366 = vmatpush.msra.mxu0 %v269
    %367 = vmatmul.f32.gmra.mxu0 %v350
    %v368 = vpop.f32.mrf.mxu0
    %v369 = vadd.f32 0.0, %v368
    %370 = vdwg.mxu0
    %v371 = vadd.f32 %v255, %v369
    %v372 = vtanh.pop %v371
    %373 = vmatpush.msra.mxu0 %v284
    %374 = vmatpush.msra.mxu0 %v283
    %375 = vmatpush.msra.mxu0 %v282
    %376 = vmatpush.msra.mxu0 %v281
    %377 = vmatpush.msra.mxu0 %v280
    %378 = vmatpush.msra.mxu0 %v279
    %379 = vmatpush.msra.mxu0 %v278
    %380 = vmatpush.msra.mxu0 %v277
    %381 = vmatpush.msra.mxu0 %v276
    %382 = vmatpush.msra.mxu0 %v275
    %383 = vmatpush.msra.mxu0 %v274
    %384 = vmatpush.msra.mxu0 %v273
    %385 = vmatpush.msra.mxu0 %v272
    %386 = vmatpush.msra.mxu0 %v271
    %387 = vmatpush.msra.mxu0 %v270
    %388 = vmatpush.msra.mxu0 %v269
    %389 = vmatmul.f32.gmra.mxu0 %v372
    %v390 = vpop.f32.mrf.mxu0
    %v391 = vadd.f32 0.0, %v390
    %392 = vdwg.mxu0
    %v393 = vadd.f32 %v258, %v391
    %v394 = vtanh.pop %v393
    %395 = vmatpush.msra.mxu0 %v284
    %396 = vmatpush.msra.mxu0 %v283
    %397 = vmatpush.msra.mxu0 %v282
    %398 = vmatpush.msra.mxu0 %v281
    %399 = vmatpush.msra.mxu0 %v280
    %400 = vmatpush.msra.mxu0 %v279
    %401 = vmatpush.msra.mxu0 %v278
    %402 = vmatpush.msra.mxu0 %v277
    %403 = vmatpush.msra.mxu0 %v276
    %404 = vmatpush.msra.mxu0 %v275
    %405 = vmatpush.msra.mxu0 %v274
    %406 = vmatpush.msra.mxu0 %v273
    %407 = vmatpush.msra.mxu0 %v272
    %408 = vmatpush.msra.mxu0 %v271
    %409 = vmatpush.msra.mxu0 %v270
    %410 = vmatpush.msra.mxu0 %v269
    %411 = vmatmul.f32.gmra.mxu0 %v394
    %v412 = vpop.f32.mrf.mxu0
    %v413 = vadd.f32 0.0, %v412
    %414 = vdwg.mxu0
    %v415 = vadd.f32 %v261, %v413
    %v416 = vtanh.pop %v415
    %417 = vmatpush.msra.mxu0 %v284
    %418 = vmatpush.msra.mxu0 %v283
    %419 = vmatpush.msra.mxu0 %v282
    %420 = vmatpush.msra.mxu0 %v281
    %421 = vmatpush.msra.mxu0 %v280
    %422 = vmatpush.msra.mxu0 %v279
    %423 = vmatpush.msra.mxu0 %v278
    %424 = vmatpush.msra.mxu0 %v277
    %425 = vmatpush.msra.mxu0 %v276
    %426 = vmatpush.msra.mxu0 %v275
    %427 = vmatpush.msra.mxu0 %v274
    %428 = vmatpush.msra.mxu0 %v273
    %429 = vmatpush.msra.mxu0 %v272
    %430 = vmatpush.msra.mxu0 %v271
    %431 = vmatpush.msra.mxu0 %v270
    %432 = vmatpush.msra.mxu0 %v269
    %433 = vmatmul.f32.gmra.mxu0 %v416
    %v434 = vpop.f32.mrf.mxu0
    %v435 = vadd.f32 0.0, %v434
    %436 = vdwg.mxu0
    %v437 = vadd.f32 %v264, %v435
    %v438 = vtanh.pop %v437
    %439 = vmatpush.msra.mxu0 %v284
    %440 = vmatpush.msra.mxu0 %v283
    %441 = vmatpush.msra.mxu0 %v282
    %442 = vmatpush.msra.mxu0 %v281
    %443 = vmatpush.msra.mxu0 %v280
    %444 = vmatpush.msra.mxu0 %v279
    %445 = vmatpush.msra.mxu0 %v278
    %446 = vmatpush.msra.mxu0 %v277
    %447 = vmatpush.msra.mxu0 %v276
    %448 = vmatpush.msra.mxu0 %v275
    %449 = vmatpush.msra.mxu0 %v274
    %450 = vmatpush.msra.mxu0 %v273
    %451 = vmatpush.msra.mxu0 %v272
    %452 = vmatpush.msra.mxu0 %v271
    %453 = vmatpush.msra.mxu0 %v270
    %454 = vmatpush.msra.mxu0 %v269
    %455 = vmatmul.f32.gmra.mxu0 %v438
    %v456 = vpop.f32.mrf.mxu0
    %v457 = vadd.f32 0.0, %v456
    %458 = vdwg.mxu0
    %v459 = vadd.f32 %v267, %v457
    %v460 = vtanh.pop %v459
    %461 = vst [vmem:[#allocation11] sm:$0xff] %v460
    %v462 = vld [vmem:[#allocation8] sm:$0xff]
    %v463 = vld [vmem:[#allocation8 + $0x8] sm:$0xff]
    %v464 = vld [vmem:[#allocation8 + $0x10] sm:$0xff]
    %v465 = vld [vmem:[#allocation8 + $0x18] sm:$0xff]
    %v466 = vld [vmem:[#allocation8 + $0x20] sm:$0xff]
    %v467 = vld [vmem:[#allocation8 + $0x28] sm:$0xff]
    %v468 = vld [vmem:[#allocation8 + $0x30] sm:$0xff]
    %v469 = vld [vmem:[#allocation8 + $0x38] sm:$0xff]
    %v470 = vld [vmem:[#allocation8 + $0x40] sm:$0xff]
    %v471 = vld [vmem:[#allocation8 + $0x48] sm:$0xff]
    %v472 = vld [vmem:[#allocation8 + $0x50] sm:$0xff]
    %v473 = vld [vmem:[#allocation8 + $0x58] sm:$0xff]
    %v474 = vld [vmem:[#allocation8 + $0x60] sm:$0xff]
    %v475 = vld [vmem:[#allocation8 + $0x68] sm:$0xff]
    %v476 = vld [vmem:[#allocation8 + $0x70] sm:$0xff]
    %v477 = vld [vmem:[#allocation8 + $0x78] sm:$0xff]
    %v478 = vld [vmem:[%s6] sm:$0x1]
    %v480 = vperm.slane %v478, 0
    %482 = vmatpush.msra.mxu0 %v477
    %483 = vmatpush.msra.mxu0 %v476
    %484 = vmatpush.msra.mxu0 %v475
    %485 = vmatpush.msra.mxu0 %v474
    %486 = vmatpush.msra.mxu0 %v473
    %487 = vmatpush.msra.mxu0 %v472
    %488 = vmatpush.msra.mxu0 %v471
    %489 = vmatpush.msra.mxu0 %v470
    %490 = vmatpush.msra.mxu0 %v469
    %491 = vmatpush.msra.mxu0 %v468
    %492 = vmatpush.msra.mxu0 %v467
    %493 = vmatpush.msra.mxu0 %v466
    %494 = vmatpush.msra.mxu0 %v465
    %495 = vmatpush.msra.mxu0 %v464
    %496 = vmatpush.msra.mxu0 %v463
    %497 = vmatpush.msra.mxu0 %v462
    %498 = vmatmul.f32.gmra.mxu0 %v460
    %v499 = vpop.f32.mrf.mxu0
    %v500 = vadd.f32 %v480, %v499
    %501 = vdwg.mxu0
    %502 = vst [vmem:[#allocation10] sm:$0xff] %v500
    // Predicated region
    $region46: #{tpu_custom_call.1} parent=1 // pred_check
      _
    $region47: #{tpu_custom_call.1} parent=1 // pred_check_branch
      %504 = sbr.rel (0) target = $region49
    $region48: #{tpu_custom_call.1} parent=1 // pred_region
      %506 = vsyncadd [#allocation4], 0
      %s508 = sshll.u32 [#allocation10], 4
      %s509 = int_to_ptr.vmem [resolvable:$true] %s508
      %s510 = sshll.u32 %s7, 4
      %s511 = int_to_ptr.hbm [resolvable:$true] %s510
      %513 = dma.vmem_to_hbm [thread:$0]  %s509, 128, %s511, [#allocation4]
    $region49: #{tpu_custom_call.1} parent=1 // pred_fallthru
      _
    // Predicated region
    $region50: #{tpu_custom_call.1} parent=1 // pred_check
      _
    $region51: #{tpu_custom_call.1} parent=1 // pred_check_branch
      %515 = sbr.rel (0) target = $region53
    $region52: #{tpu_custom_call.1} parent=1 // pred_region
      %517 = vsyncadd [#allocation12], 0
      %s519 = sshll.u32 [#allocation11], 4
      %s520 = int_to_ptr.vmem [resolvable:$true] %s519
      %s521 = sshll.u32 %s8, 4
      %s522 = int_to_ptr.hbm [resolvable:$true] %s521
      %524 = dma.vmem_to_hbm [thread:$0]  %s520, 128, %s522, [#allocation12]
    $region53: #{tpu_custom_call.1} parent=1 // pred_fallthru
      _
    // Predicated region
    $region54: #{tpu_custom_call.1} parent=1 // pred_check
      _
    $region55: #{tpu_custom_call.1} parent=1 // pred_check_branch
      %526 = sbr.rel (0) target = $region57
    $region56: #{tpu_custom_call.1} parent=1 // pred_region
      %528 = dma.done [#allocation4], 128
    $region57: #{tpu_custom_call.1} parent=1 // pred_fallthru
      _
    // Predicated region
    $region58: #{tpu_custom_call.1} parent=1 // pred_check
      _
    $region59: #{tpu_custom_call.1} parent=1 // pred_check_branch
      %530 = sbr.rel (0) target = $region61
    $region60: #{tpu_custom_call.1} parent=1 // pred_region
      %532 = dma.done [#allocation12], 128
    $region61: #{tpu_custom_call.1} parent=1 // pred_fallthru
      _
    %533 = vsyncpa [#allocation3], 1
    %534 = vsyncpa [#allocation6], 1
    %535 = vsyncpa [#allocation9], 1
    %536 = vsyncpa [#allocation4], 1
    %537 = vsyncpa [#allocation12], 1

</llo_original>
